<compile_context>
chip_gen: v7x
topology: tpu7x:2x2x1
jax: 0.10.0
libtpu: 0.0.40
codegen_flags: <defaults>
</compile_context>

<pallas_src>
import jax
import jax.numpy as jnp
from typing import NamedTuple
from jax.experimental import pallas as pl
from jax.experimental.pallas import tpu as pltpu


def _round_up(x, m):
    return (x + m - 1) // m * m


def _cdiv(a, b):
    return (a + b - 1) // b


class GLUParams(NamedTuple):
    w_fused: jax.Array   # (in_size, num_n * 2 * tn), compute dtype (bf16)
    b_fused: jax.Array   # (1, num_n * 2 * tn), float32
    out_size: int        # original (unpadded) output width
    out_p: int           # padded output width = num_n * tn
    n_tile: int          # tn (multiple of 128)


# ---------------------------------------------------------------------------
# Kernel: one (batch tile, N tile) -> y = x @ [W1_j | W2_j] + [b1_j | b2_j]
#         out = sigmoid(y[:, :tn]) * y[:, tn:]
# ---------------------------------------------------------------------------
def _glu_kernel(x_ref, w_ref, b_ref, o_ref):
    tn = o_ref.shape[-1]
    # x arrives in its native dtype (no wrapper-side HBM cast pass); cast to
    # the MXU compute dtype right before the dot (cheap VPU op).
    x = x_ref[...].astype(w_ref.dtype)
    # one wide MXU matmul covers BOTH linear branches of this N tile;
    # accumulation stays in f32.
    y = jnp.dot(x, w_ref[...], preferred_element_type=jnp.float32)
    y = y + b_ref[...]                              # single fused f32 bias add
    gate = y[:, :tn]                                # fc1 columns of this tile
    lin = y[:, tn:]                                 # fc2 columns of this tile
    # sigmoid via EUP exp + approx EUP reciprocal (separate VLIW slot,
    # ~free in the mem/MXU-bound regime).
    sig = pl.reciprocal(1.0 + jnp.exp(-gate), approx=True)
    o_ref[...] = (sig * lin).astype(o_ref.dtype)


# ---------------------------------------------------------------------------
# One-time parameter preparation (cache outside the hot path)
# ---------------------------------------------------------------------------
def prepare_glu_params(w1, b1, w2, b2, *, compute_dtype=jnp.bfloat16, n_tile=512):
    """Fuse / pad / cast the two nn.Linear parameter sets once.

    w1, w2: (output_size, input_size); b1, b2: (output_size,)

    Layout: the output width is padded to out_p = nb * tn (tn multiple of 128)
    and the fused weight is column-interleaved per N tile:
        [W1_tile0 | W2_tile0 | W1_tile1 | W2_tile1 | ...]
    so one BlockSpec slab of width 2*tn holds the MATCHING fc1/fc2 columns.
    """
    out_size, in_size = w1.shape
    assert w2.shape == (out_size, in_size)
    tn = min(_round_up(n_tile, 128), _round_up(out_size, 128))
    out_p = _round_up(out_size, tn)
    nb = out_p // tn
    pad = out_p - out_size

    def _prep_w(w):                                   # (out, in) -> (in, nb, tn)
        return jnp.pad(jnp.transpose(w), ((0, 0), (0, pad))).reshape(in_size, nb, tn)

    def _prep_b(b):                                   # (out,) -> (nb, tn)
        return jnp.pad(b, (0, pad)).reshape(nb, tn)

    w_fused = jnp.stack([_prep_w(w1), _prep_w(w2)], axis=2)      # (in, nb, 2, tn)
    w_fused = w_fused.reshape(in_size, nb * 2 * tn).astype(compute_dtype)
    b_fused = jnp.stack([_prep_b(b1), _prep_b(b2)], axis=1)      # (nb, 2, tn)
    b_fused = b_fused.reshape(1, nb * 2 * tn).astype(jnp.float32)
    return GLUParams(w_fused, b_fused, out_size, out_p, tn)


# ---------------------------------------------------------------------------
# Hot-path apply
# ---------------------------------------------------------------------------
def glu_apply(x, params, *, batch_tile=512, out_dtype=None):
    w_fused, b_fused, out_size, out_p, tn = params
    in_size = x.shape[-1]
    num_n = out_p // tn
    assert w_fused.shape == (in_size, num_n * 2 * tn)
    out_dtype = x.dtype if out_dtype is None else jnp.dtype(out_dtype)

    x2d = x.reshape(-1, in_size)       # collapses leading dims only -> no HBM copy
    B = x2d.shape[0]

    # ---- batch (M) tile: big tile fills the MXU / amortizes per-step overhead.
    # Multiple of 16 (bf16 sublane packing) unless a single block covers all of B.
    if B <= batch_tile:
        bt = B                                        # one full block, no padded rows
    else:
        bt = max(16, _round_up(batch_tile, 16))
    num_m = _cdiv(B, bt)                              # ragged tail -> partial last block
    grid = (num_n, num_m)                             # N outer: weight tile resident across M

    x_isz = jnp.dtype(x.dtype).itemsize
    w_isz = jnp.dtype(w_fused.dtype).itemsize
    o_isz = jnp.dtype(out_dtype).itemsize

    cost = pl.CostEstimate(
        flops=2 * B * in_size * 2 * out_p,
        transcendentals=B * out_p,
        bytes_accessed=(num_n * B * in_size * x_isz
                        + int(w_fused.size) * w_isz
                        + int(b_fused.size) * 4
                        + B * out_p * o_isz),
    )

    # ---- VMEM budget, capped by the actual chip's VMEM (v7x: 64 MiB per TC).
    w_bufs = 1 if num_n == 1 else 2                   # resident vs streamed weight tiles
    vmem_est = (w_bufs * (in_size * 2 * tn * w_isz + 2 * tn * 4)
                + 2 * bt * in_size * x_isz            # double-buffered x tiles
                + 2 * bt * tn * o_isz                 # double-buffered out tiles
                + 2 * bt * 2 * tn * 4                 # f32 y intermediate + gate/lin
                + (4 << 20))                          # headroom
    try:
        vmem_cap = int(pltpu.get_tpu_info().vmem_capacity_bytes)
    except Exception:
        vmem_cap = 64 << 20                           # conservative fallback (v7x)
    vmem_limit = int(min(max(vmem_est, 32 << 20), int(0.85 * vmem_cap)))

    # Single N tile -> weight/bias block index never changes: single-buffer
    # (halves their VMEM footprint).  With N tiling, keep default double
    # buffering so the weight stream overlaps the MXU.
    res_kw = {"pipeline_mode": pl.Buffered(1)} if num_n == 1 else {}

    # TODO(synk): for in_size >= ~4096 add a K grid axis + f32 accumulator scratch.
    out = pl.pallas_call(
        _glu_kernel,
        out_shape=jax.ShapeDtypeStruct((B, out_p), out_dtype),
        grid_spec=pltpu.PrefetchScalarGridSpec(
            num_scalar_prefetch=0,
            grid=grid,
            in_specs=[
                pl.BlockSpec((bt, in_size), lambda j, i: (i, 0)),                 # x tile
                pl.BlockSpec((in_size, 2 * tn), lambda j, i: (0, j), **res_kw),   # fused W tile
                pl.BlockSpec((1, 2 * tn), lambda j, i: (0, j), **res_kw),         # fused b tile
            ],
            out_specs=pl.BlockSpec((bt, tn), lambda j, i: (i, j)),
        ),
        compiler_params=pltpu.CompilerParams(
            # both axes independent; on v7x megacore the outer (N) axis splits
            # across the two TensorCores -> each core holds a disjoint weight half.
            dimension_semantics=("parallel", "parallel"),
            vmem_limit_bytes=vmem_limit,
        ),
        cost_estimate=cost,
    )(x2d, w_fused, b_fused)

    if out_p != out_size:                             # only slice when padding occurred
        out = out[:, :out_size]
    return out.reshape(*x.shape[:-1], out_size)


def glu_forward(x, w1, b1, w2, b2, *, batch_tile=512, compute_dtype=jnp.bfloat16,
                out_dtype=None):
    """Convenience wrapper matching the PyTorch module.  In a real model, call
    prepare_glu_params once and reuse its result across forward calls."""
    params = prepare_glu_params(w1, b1, w2, b2, compute_dtype=compute_dtype)
    return glu_apply(x, params, batch_tile=batch_tile, out_dtype=out_dtype)


def _init_linear_params(key, in_size, out_size):
    # deterministic synthetic init (mimics PyTorch uniform(-1/sqrt(in), 1/sqrt(in)))
    kw, kb = jax.random.split(key)
    bound = 1.0 / jnp.sqrt(jnp.float32(in_size))
    w = jax.random.uniform(kw, (out_size, in_size), jnp.float32, -bound, bound)
    b = jax.random.uniform(kb, (out_size,), jnp.float32, -bound, bound)
    return w, b


if __name__ == "__main__":
    key = jax.random.PRNGKey(0)
    k_x1, k_fc1, k_fc2, k_x2, k_fc3, k_fc4 = jax.random.split(key, 6)

    # ---- case 1: ragged batch, non-lane-dense output width (single N tile,
    #      whole batch in one full block, column-padding path)
    batch, input_size, output_size = 200, 128, 96
    x = jax.random.normal(k_x1, (batch, input_size), jnp.float32)
    w1, b1 = _init_linear_params(k_fc1, input_size, output_size)
    w2, b2 = _init_linear_params(k_fc2, input_size, output_size)
    params = prepare_glu_params(w1, b1, w2, b2)        # bf16 fused W, f32 fused b
    out = jax.block_until_ready(glu_apply(x, params))
    ref = jax.nn.sigmoid(x @ w1.T + b1) * (x @ w2.T + b2)
    assert out.shape == ref.shape
    assert jnp.allclose(out, ref, atol=2e-2, rtol=2e-2), "case 1 mismatch vs reference"

    # ---- case 2: N-tiled path (2 output tiles) + partial trailing batch block
    batch2, in2, out2 = 600, 64, 256
    x2 = jax.random.normal(k_x2, (batch2, in2), jnp.float32)
    w3, b3 = _init_linear_params(k_fc3, in2, out2)
    w4, b4 = _init_linear_params(k_fc4, in2, out2)
    params2 = prepare_glu_params(w3, b3, w4, b4, n_tile=128)
    out2_arr = jax.block_until_ready(glu_apply(x2, params2, batch_tile=256))
    ref2 = jax.nn.sigmoid(x2 @ w3.T + b3) * (x2 @ w4.T + b4)
    assert out2_arr.shape == ref2.shape
    assert jnp.allclose(out2_arr, ref2, atol=2e-2, rtol=2e-2), "case 2 mismatch vs reference"

    print("KERNEL_OK")
</pallas_src>

<mosaic_0001>
module attributes {stable_mosaic.version = 11 : i64} {
  func.func @_glu_kernel(%arg0: i32, %arg1: i32, %arg2: memref<200x128xf32, #tpu.memory_space<vmem>>, %arg3: memref<128x256xbf16, #tpu.memory_space<vmem>>, %arg4: memref<1x256xf32, #tpu.memory_space<vmem>>, %arg5: memref<200x128xf32, #tpu.memory_space<vmem>>) attributes {dimension_semantics = [#tpu.dimension_semantics<parallel>, #tpu.dimension_semantics<parallel>], iteration_bounds = array<i64: 1, 1>, scalar_prefetch = 0 : i64, scratch_operands = 0 : i64, tpu.core_type = #tpu.core_type<tc>, window_params = [{transform_indices = @transform_0, window_bounds = array<i64: 200, 128>}, {pipeline_mode = #tpu.pipeline_mode<synchronous>, transform_indices = @transform_1, window_bounds = array<i64: 128, 256>}, {pipeline_mode = #tpu.pipeline_mode<synchronous>, transform_indices = @transform_2, window_bounds = array<i64: 1, 256>}, {transform_indices = @transform_3, window_bounds = array<i64: 200, 128>}]} {
    %c0 = arith.constant 0 : index
    %c0_0 = arith.constant 0 : index
    %0 = vector.load %arg2[%c0, %c0_0] : memref<200x128xf32, #tpu.memory_space<vmem>>, vector<200x128xf32>
    %1 = arith.truncf %0 : vector<200x128xf32> to vector<200x128xbf16>
    %c0_1 = arith.constant 0 : index
    %c0_2 = arith.constant 0 : index
    %2 = vector.load %arg3[%c0_1, %c0_2] : memref<128x256xbf16, #tpu.memory_space<vmem>>, vector<128x256xbf16>
    %cst = arith.constant dense<0.000000e+00> : vector<200x256xf32>
    %3 = tpu.matmul %1, %2, %cst {dimension_numbers = #tpu.dot_dimension_numbers<[1], [0], [0], [1], [0, 0, 1, 1], [], []>} : vector<200x128xbf16>, vector<128x256xbf16>, vector<200x256xf32> -> vector<200x256xf32>
    %c0_3 = arith.constant 0 : index
    %c0_4 = arith.constant 0 : index
    %4 = vector.load %arg4[%c0_3, %c0_4] : memref<1x256xf32, #tpu.memory_space<vmem>>, vector<1x256xf32>
    %5 = vector.broadcast %4 : vector<1x256xf32> to vector<200x256xf32>
    %6 = arith.addf %3, %5 : vector<200x256xf32>
    %7 = vector.extract_strided_slice %6 {offsets = [0, 0], sizes = [200, 128], strides = [1, 1]} : vector<200x256xf32> to vector<200x128xf32>
    %8 = vector.extract_strided_slice %6 {offsets = [0, 128], sizes = [200, 128], strides = [1, 1]} : vector<200x256xf32> to vector<200x128xf32>
    %cst_5 = arith.constant 0.000000e+00 : f32
    %9 = vector.broadcast %cst_5 : f32 to vector<200x128xf32>
    %10 = arith.subf %9, %7 : vector<200x128xf32>
    %11 = math.exp %10 : vector<200x128xf32>
    %cst_6 = arith.constant 1.000000e+00 : f32
    %12 = vector.broadcast %cst_6 : f32 to vector<200x128xf32>
    %13 = arith.addf %12, %11 : vector<200x128xf32>
    %14 = tpu.reciprocal %13 {approx = true} : vector<200x128xf32> -> vector<200x128xf32>
    %15 = arith.mulf %14, %8 : vector<200x128xf32>
    %c0_7 = arith.constant 0 : index
    %c0_8 = arith.constant 0 : index
    %16 = vector.load %arg5[%c0_7, %c0_8] : memref<200x128xf32, #tpu.memory_space<vmem>>, vector<200x128xf32>
    tpu.vector_store %arg5[%c0_7, %c0_8], %15 {strides = array<i32>} : memref<200x128xf32, #tpu.memory_space<vmem>>, vector<200x128xf32>,
    return
  }
  func.func @transform_0(%arg0: i32, %arg1: i32) -> (i32, i32) {
    %c0_i32 = arith.constant 0 : i32
    %c0_i32_0 = arith.constant 0 : i32
    return %arg1, %c0_i32 : i32, i32
  }
  func.func @transform_1(%arg0: i32, %arg1: i32) -> (i32, i32) {
    %c0_i32 = arith.constant 0 : i32
    %c0_i32_0 = arith.constant 0 : i32
    return %c0_i32, %arg0 : i32, i32
  }
  func.func @transform_2(%arg0: i32, %arg1: i32) -> (i32, i32) {
    %c0_i32 = arith.constant 0 : i32
    %c0_i32_0 = arith.constant 0 : i32
    return %c0_i32, %arg0 : i32, i32
  }
  func.func @transform_3(%arg0: i32, %arg1: i32) -> (i32, i32) {
    %c0_i32 = arith.constant 0 : i32
    return %arg1, %arg0 : i32, i32
  }
}

</mosaic_0001>

<llo_original>
// kernel: tpu_custom_call.1
$region0: #{tpu_custom_call.1}
  #allocation0 [shape = 'u32[]', space=smem, size = 0x4, offset = 0x4, fixed_abs, tag = 'smem constant byte address 0x4 - core index']
  #allocation1 [shape = 'u32[144,128]{1,0:T(1,128)}', space=vmem, size = 0x12000, scoped, tag = 'internal scratch']
  %s0 = inlined_call_operand.hbm [shape: f32[200,128], index: 0, kind: input, shape index: {}]
  %s1 = inlined_call_operand.hbm [shape: bf16[128,256], index: 1, kind: input, shape index: {}]
  %s2 = inlined_call_operand.vmem [shape: f32[1,256], index: 2, kind: input, shape index: {}]
  %s3 = inlined_call_operand.hbm [shape: f32[200,128], index: 3, kind: output, shape index: {}]
  %s4 = sld [smem:[#allocation0]]
  $region30: #{tpu_custom_call.1} parent=0
    _
  %s6 = ssub.s32 1, %s4
  %s7 = scalar_select 0, %s6, %s4
  $region1: #{tpu_custom_call.1} parent=0
    #allocation2 [shape = 'u8[102400]{0}', space=vmem, size = 0x19000, scoped, tag = 'input window, operand 0, single buffered']
    #allocation3 [shape = 's32[1]{0}', space=sflag, size = 0x4, scoped, tag = 'scoped memory for tpu_custom_call.1']
    #allocation4 [shape = 's32[1]{0}', space=sflag, size = 0x4, scoped, tag = 'scoped memory for tpu_custom_call.1']
    #allocation5 [shape = 'u8[65536]{0}', space=vmem, size = 0x10000, scoped, tag = 'input window, operand 1, single buffered']
    #allocation6 [shape = 's32[1]{0}', space=sflag, size = 0x4, scoped, tag = 'scoped memory for tpu_custom_call.1']
    #allocation7 [shape = 'u8[102400]{0}', space=vmem, size = 0x19000, scoped, tag = 'output window, operand 0, single buffered']
    %8 = vsyncpa [#allocation3], 0
    %9 = vsyncpa [#allocation6], 0
    %10 = vsyncpa [#allocation4], 0
    // Predicated region
    $region2: #{tpu_custom_call.1} parent=1 // pred_check
      _
    $region3: #{tpu_custom_call.1} parent=1 // pred_check_branch
      %12 = sbr.rel (0) target = $region5
    $region4: #{tpu_custom_call.1} parent=1 // pred_region
      %s14 = ssub.s32 3200, 3200
      %15 = vsyncadd [#allocation3], %s14
      %s16 = sshll.u32 [#allocation2], 4
      %s17 = int_to_ptr.vmem [resolvable:$true] %s16
      %22 = dma.hbm_to_vmem [thread:$0]  %s0, 3200, %s17, [#allocation3], 128, 128, 8
    $region5: #{tpu_custom_call.1} parent=1 // pred_fallthru
      _
    // Predicated region
    $region6: #{tpu_custom_call.1} parent=1 // pred_check
      _
    $region7: #{tpu_custom_call.1} parent=1 // pred_check_branch
      %24 = sbr.rel (0) target = $region9
    $region8: #{tpu_custom_call.1} parent=1 // pred_region
      %s26 = ssub.s32 2048, 2048
      %27 = vsyncadd [#allocation6], %s26
      %s28 = sshll.u32 [#allocation5], 4
      %s29 = int_to_ptr.vmem [resolvable:$true] %s28
      %34 = dma.hbm_to_vmem [thread:$0]  %s1, 2048, %s29, [#allocation6], 128, 128, 8
    $region9: #{tpu_custom_call.1} parent=1 // pred_fallthru
      _
    // Predicated region
    $region10: #{tpu_custom_call.1} parent=1 // pred_check
      _
    $region11: #{tpu_custom_call.1} parent=1 // pred_check_branch
      %36 = sbr.rel (0) target = $region13
    $region12: #{tpu_custom_call.1} parent=1 // pred_region
      _
    $region13: #{tpu_custom_call.1} parent=1 // pred_fallthru
      _
    // Predicated region
    $region14: #{tpu_custom_call.1} parent=1 // pred_check
      _
    $region15: #{tpu_custom_call.1} parent=1 // pred_check_branch
      %38 = sbr.rel (0) target = $region17
    $region16: #{tpu_custom_call.1} parent=1 // pred_region
      %39 = dma.done [#allocation3], 3200
    $region17: #{tpu_custom_call.1} parent=1 // pred_fallthru
      _
    // Predicated region
    $region18: #{tpu_custom_call.1} parent=1 // pred_check
      _
    $region19: #{tpu_custom_call.1} parent=1 // pred_check_branch
      %41 = sbr.rel (0) target = $region21
    $region20: #{tpu_custom_call.1} parent=1 // pred_region
      %42 = dma.done [#allocation6], 2048
    $region21: #{tpu_custom_call.1} parent=1 // pred_fallthru
      _
    %v44 = vld [vmem:[#allocation2] sm:$0xff]
    %v45 = vld [vmem:[#allocation2 + $0x8] sm:$0xff]
    %v46 = vld [vmem:[#allocation2 + $0x10] sm:$0xff]
    %v47 = vld [vmem:[#allocation2 + $0x18] sm:$0xff]
    %v48 = vld [vmem:[#allocation2 + $0x20] sm:$0xff]
    %v49 = vld [vmem:[#allocation2 + $0x28] sm:$0xff]
    %v50 = vld [vmem:[#allocation2 + $0x30] sm:$0xff]
    %v51 = vld [vmem:[#allocation2 + $0x38] sm:$0xff]
    %v52 = vld [vmem:[#allocation2 + $0x40] sm:$0xff]
    %v53 = vld [vmem:[#allocation2 + $0x48] sm:$0xff]
    %v54 = vld [vmem:[#allocation2 + $0x50] sm:$0xff]
    %v55 = vld [vmem:[#allocation2 + $0x58] sm:$0xff]
    %v56 = vld [vmem:[#allocation2 + $0x60] sm:$0xff]
    %v57 = vld [vmem:[#allocation2 + $0x68] sm:$0xff]
    %v58 = vld [vmem:[#allocation2 + $0x70] sm:$0xff]
    %v59 = vld [vmem:[#allocation2 + $0x78] sm:$0xff]
    %v60 = vld [vmem:[#allocation2 + $0x80] sm:$0xff]
    %v61 = vld [vmem:[#allocation2 + $0x88] sm:$0xff]
    %v62 = vld [vmem:[#allocation2 + $0x90] sm:$0xff]
    %v63 = vld [vmem:[#allocation2 + $0x98] sm:$0xff]
    %v64 = vld [vmem:[#allocation2 + $0xa0] sm:$0xff]
    %v65 = vld [vmem:[#allocation2 + $0xa8] sm:$0xff]
    %v66 = vld [vmem:[#allocation2 + $0xb0] sm:$0xff]
    %v67 = vld [vmem:[#allocation2 + $0xb8] sm:$0xff]
    %v68 = vld [vmem:[#allocation2 + $0xc0] sm:$0xff]
    %v69 = vpack.c.bf16 %v45, %v44
    %v70 = vpack.c.bf16 %v47, %v46
    %v71 = vpack.c.bf16 %v49, %v48
    %v72 = vpack.c.bf16 %v51, %v50
    %v73 = vpack.c.bf16 %v53, %v52
    %v74 = vpack.c.bf16 %v55, %v54
    %v75 = vpack.c.bf16 %v57, %v56
    %v76 = vpack.c.bf16 %v59, %v58
    %v77 = vpack.c.bf16 %v61, %v60
    %v78 = vpack.c.bf16 %v63, %v62
    %v79 = vpack.c.bf16 %v65, %v64
    %v80 = vpack.c.bf16 %v67, %v66
    %v81 = vpack.c.bf16 %v68, %v68
    %v82 = vld [vmem:[#allocation5] sm:$0xff]
    %v83 = vld [vmem:[#allocation5 + $0x8] sm:$0xff]
    %v84 = vld [vmem:[#allocation5 + $0x10] sm:$0xff]
    %v85 = vld [vmem:[#allocation5 + $0x18] sm:$0xff]
    %v86 = vld [vmem:[#allocation5 + $0x20] sm:$0xff]
    %v87 = vld [vmem:[#allocation5 + $0x28] sm:$0xff]
    %v88 = vld [vmem:[#allocation5 + $0x30] sm:$0xff]
    %v89 = vld [vmem:[#allocation5 + $0x38] sm:$0xff]
    %v90 = vld [vmem:[#allocation5 + $0x40] sm:$0xff]
    %v91 = vld [vmem:[#allocation5 + $0x48] sm:$0xff]
    %v92 = vld [vmem:[#allocation5 + $0x50] sm:$0xff]
    %v93 = vld [vmem:[#allocation5 + $0x58] sm:$0xff]
    %v94 = vld [vmem:[#allocation5 + $0x60] sm:$0xff]
    %v95 = vld [vmem:[#allocation5 + $0x68] sm:$0xff]
    %v96 = vld [vmem:[#allocation5 + $0x70] sm:$0xff]
    %v97 = vld [vmem:[#allocation5 + $0x78] sm:$0xff]
    %v98 = vld [vmem:[%s2] sm:$0x3]
    %v100 = vlaneseq
    %v101 = vshrl.u32 %v100, 7
    %v102 = vsub.s32 0, %v101
    %v103 = vrot.slane %v98, %v102
    %v104 = vlaneseq
    %v105 = vshrl.u32 %v104, 7
    %v106 = vsub.s32 1, %v105
    %v107 = vrot.slane %v98, %v106
    %v126 = vunpack.c.l.b16 %v82
    %v127 = vunpack.c.h.b16 %v82
    %v128 = vunpack.c.l.b16 %v83
    %v129 = vunpack.c.h.b16 %v83
    %v130 = vunpack.c.l.b16 %v84
    %v131 = vunpack.c.h.b16 %v84
    %v132 = vunpack.c.l.b16 %v85
    %v133 = vunpack.c.h.b16 %v85
    %v134 = vunpack.c.l.b16 %v86
    %v135 = vunpack.c.h.b16 %v86
    %v136 = vunpack.c.l.b16 %v87
    %v137 = vunpack.c.h.b16 %v87
    %v138 = vunpack.c.l.b16 %v88
    %v139 = vunpack.c.h.b16 %v88
    %v140 = vunpack.c.l.b16 %v89
    %v141 = vunpack.c.h.b16 %v89
    %v142 = vunpack.c.l.b16 %v90
    %v143 = vunpack.c.h.b16 %v90
    %v144 = vunpack.c.l.b16 %v91
    %v145 = vunpack.c.h.b16 %v91
    %v146 = vunpack.c.l.b16 %v92
    %v147 = vunpack.c.h.b16 %v92
    %v148 = vunpack.c.l.b16 %v93
    %v149 = vunpack.c.h.b16 %v93
    %v150 = vunpack.c.l.b16 %v94
    %v151 = vunpack.c.h.b16 %v94
    %v152 = vunpack.c.l.b16 %v95
    %v153 = vunpack.c.h.b16 %v95
    %v154 = vunpack.c.l.b16 %v96
    %v155 = vunpack.c.h.b16 %v96
    %v156 = vunpack.c.l.b16 %v97
    %v157 = vunpack.c.h.b16 %v97
    %v158 = vpack.c.b16 %v128, %v126
    %v159 = vpack.c.b16 %v129, %v127
    %v160 = vpack.c.b16 %v132, %v130
    %v161 = vpack.c.b16 %v133, %v131
    %v162 = vpack.c.b16 %v136, %v134
    %v163 = vpack.c.b16 %v137, %v135
    %v164 = vpack.c.b16 %v140, %v138
    %v165 = vpack.c.b16 %v141, %v139
    %v166 = vpack.c.b16 %v144, %v142
    %v167 = vpack.c.b16 %v145, %v143
    %v168 = vpack.c.b16 %v148, %v146
    %v169 = vpack.c.b16 %v149, %v147
    %v170 = vpack.c.b16 %v152, %v150
    %v171 = vpack.c.b16 %v153, %v151
    %v172 = vpack.c.b16 %v156, %v154
    %v173 = vpack.c.b16 %v157, %v155
    %190 = vmatprep.subr.bf16.mxu0 %v159
    %191 = vmatpush1.bf16.msra.mxu0 %v158
    %192 = vmatprep.subr.bf16.mxu0 %v161
    %193 = vmatpush1.bf16.msra.mxu0 %v160
    %194 = vmatprep.subr.bf16.mxu0 %v163
    %195 = vmatpush1.bf16.msra.mxu0 %v162
    %196 = vmatprep.subr.bf16.mxu0 %v165
    %197 = vmatpush1.bf16.msra.mxu0 %v164
    %198 = vmatprep.subr.bf16.mxu0 %v167
    %199 = vmatpush1.bf16.msra.mxu0 %v166
    %200 = vmatprep.subr.bf16.mxu0 %v169
    %201 = vmatpush1.bf16.msra.mxu0 %v168
    %202 = vmatprep.subr.bf16.mxu0 %v171
    %203 = vmatpush1.bf16.msra.mxu0 %v170
    %204 = vmatprep.subr.bf16.mxu0 %v173
    %205 = vmatpush1.bf16.msra.mxu0 %v172
    %206 = vmatprep.subr.bf16.mxu0 0
    %207 = vmatpush1.bf16.msra.mxu0 0
    %208 = vmatprep.subr.bf16.mxu0 0
    %209 = vmatpush1.bf16.msra.mxu0 0
    %210 = vmatprep.subr.bf16.mxu0 0
    %211 = vmatpush1.bf16.msra.mxu0 0
    %212 = vmatprep.subr.bf16.mxu0 0
    %213 = vmatpush1.bf16.msra.mxu0 0
    %214 = vmatprep.subr.bf16.mxu0 0
    %215 = vmatpush1.bf16.msra.mxu0 0
    %216 = vmatprep.subr.bf16.mxu0 0
    %217 = vmatpush1.bf16.msra.mxu0 0
    %218 = vmatprep.subr.bf16.mxu0 0
    %219 = vmatpush1.bf16.msra.mxu0 0
    %220 = vmatprep.subr.bf16.mxu0 0
    %221 = vmatpush1.bf16.msra.mxu0 0
    %222 = vmatprep.mubr.bf16.mxu0 0
    %223 = vmatmul.mubr.bf16.gmra.mrb[0].mxu0 %v69
    %v224 = vpop.f32.mrb[0].mxu0
    %v225 = vadd.f32 %v103, %v224
    %v226 = vpop.f32.mrb[0].mxu0
    %v227 = vadd.f32 %v107, %v226
    %v228 = vpop.f32.mrb[0].mxu0
    %v229 = vadd.f32 %v103, %v228
    %v230 = vpop.f32.mrb[0].mxu0
    %v231 = vadd.f32 %v107, %v230
    %232 = vmatprep.mubr.bf16.mxu0 0
    %233 = vmatmul.mubr.bf16.gmra.mrb[0].mxu0 %v70
    %v234 = vpop.f32.mrb[0].mxu0
    %v235 = vadd.f32 %v103, %v234
    %v236 = vpop.f32.mrb[0].mxu0
    %v237 = vadd.f32 %v107, %v236
    %v238 = vpop.f32.mrb[0].mxu0
    %v239 = vadd.f32 %v103, %v238
    %v240 = vpop.f32.mrb[0].mxu0
    %v241 = vadd.f32 %v107, %v240
    %242 = vmatprep.mubr.bf16.mxu0 0
    %243 = vmatmul.mubr.bf16.gmra.mrb[0].mxu0 %v71
    %v244 = vpop.f32.mrb[0].mxu0
    %v245 = vadd.f32 %v103, %v244
    %v246 = vpop.f32.mrb[0].mxu0
    %v247 = vadd.f32 %v107, %v246
    %v248 = vpop.f32.mrb[0].mxu0
    %v249 = vadd.f32 %v103, %v248
    %v250 = vpop.f32.mrb[0].mxu0
    %v251 = vadd.f32 %v107, %v250
    %252 = vmatprep.mubr.bf16.mxu0 0
    %253 = vmatmul.mubr.bf16.gmra.mrb[0].mxu0 %v72
    %v254 = vpop.f32.mrb[0].mxu0
    %v255 = vadd.f32 %v103, %v254
    %v256 = vpop.f32.mrb[0].mxu0
    %v257 = vadd.f32 %v107, %v256
    %v258 = vpop.f32.mrb[0].mxu0
    %v259 = vadd.f32 %v103, %v258
    %v260 = vpop.f32.mrb[0].mxu0
    %v261 = vadd.f32 %v107, %v260
    %262 = vmatprep.mubr.bf16.mxu0 0
    %263 = vmatmul.mubr.bf16.gmra.mrb[0].mxu0 %v73
    %v264 = vpop.f32.mrb[0].mxu0
    %v265 = vadd.f32 %v103, %v264
    %v266 = vpop.f32.mrb[0].mxu0
    %v267 = vadd.f32 %v107, %v266
    %v268 = vpop.f32.mrb[0].mxu0
    %v269 = vadd.f32 %v103, %v268
    %v270 = vpop.f32.mrb[0].mxu0
    %v271 = vadd.f32 %v107, %v270
    %272 = vmatprep.mubr.bf16.mxu0 0
    %273 = vmatmul.mubr.bf16.gmra.mrb[0].mxu0 %v74
    %v274 = vpop.f32.mrb[0].mxu0
    %v275 = vadd.f32 %v103, %v274
    %v276 = vpop.f32.mrb[0].mxu0
    %v277 = vadd.f32 %v107, %v276
    %v278 = vpop.f32.mrb[0].mxu0
    %v279 = vadd.f32 %v103, %v278
    %v280 = vpop.f32.mrb[0].mxu0
    %v281 = vadd.f32 %v107, %v280
    %282 = vmatprep.mubr.bf16.mxu0 0
    %283 = vmatmul.mubr.bf16.gmra.mrb[0].mxu0 %v75
    %v284 = vpop.f32.mrb[0].mxu0
    %v285 = vadd.f32 %v103, %v284
    %v286 = vpop.f32.mrb[0].mxu0
    %v287 = vadd.f32 %v107, %v286
    %v288 = vpop.f32.mrb[0].mxu0
    %v289 = vadd.f32 %v103, %v288
    %v290 = vpop.f32.mrb[0].mxu0
    %v291 = vadd.f32 %v107, %v290
    %292 = vmatprep.mubr.bf16.mxu0 0
    %293 = vmatmul.mubr.bf16.gmra.mrb[0].mxu0 %v76
    %v294 = vpop.f32.mrb[0].mxu0
    %v295 = vadd.f32 %v103, %v294
    %v296 = vpop.f32.mrb[0].mxu0
    %v297 = vadd.f32 %v107, %v296
    %v298 = vpop.f32.mrb[0].mxu0
    %v299 = vadd.f32 %v103, %v298
    %v300 = vpop.f32.mrb[0].mxu0
    %v301 = vadd.f32 %v107, %v300
    %302 = vmatprep.mubr.bf16.mxu0 0
    %303 = vmatmul.mubr.bf16.gmra.mrb[0].mxu0 %v77
    %v304 = vpop.f32.mrb[0].mxu0
    %v305 = vadd.f32 %v103, %v304
    %v306 = vpop.f32.mrb[0].mxu0
    %v307 = vadd.f32 %v107, %v306
    %v308 = vpop.f32.mrb[0].mxu0
    %v309 = vadd.f32 %v103, %v308
    %v310 = vpop.f32.mrb[0].mxu0
    %v311 = vadd.f32 %v107, %v310
    %312 = vmatprep.mubr.bf16.mxu0 0
    %313 = vmatmul.mubr.bf16.gmra.mrb[0].mxu0 %v78
    %v314 = vpop.f32.mrb[0].mxu0
    %v315 = vadd.f32 %v103, %v314
    %v316 = vpop.f32.mrb[0].mxu0
    %v317 = vadd.f32 %v107, %v316
    %v318 = vpop.f32.mrb[0].mxu0
    %v319 = vadd.f32 %v103, %v318
    %v320 = vpop.f32.mrb[0].mxu0
    %v321 = vadd.f32 %v107, %v320
    %322 = vmatprep.mubr.bf16.mxu0 0
    %323 = vmatmul.mubr.bf16.gmra.mrb[0].mxu0 %v79
    %v324 = vpop.f32.mrb[0].mxu0
    %v325 = vadd.f32 %v103, %v324
    %v326 = vpop.f32.mrb[0].mxu0
    %v327 = vadd.f32 %v107, %v326
    %v328 = vpop.f32.mrb[0].mxu0
    %v329 = vadd.f32 %v103, %v328
    %v330 = vpop.f32.mrb[0].mxu0
    %v331 = vadd.f32 %v107, %v330
    %332 = vmatprep.mubr.bf16.mxu0 0
    %333 = vmatmul.mubr.bf16.gmra.mrb[0].mxu0 %v80
    %v334 = vpop.f32.mrb[0].mxu0
    %v335 = vadd.f32 %v103, %v334
    %v336 = vpop.f32.mrb[0].mxu0
    %v337 = vadd.f32 %v107, %v336
    %v338 = vpop.f32.mrb[0].mxu0
    %v339 = vadd.f32 %v103, %v338
    %v340 = vpop.f32.mrb[0].mxu0
    %v341 = vadd.f32 %v107, %v340
    %342 = vmatprep.mubr.bf16.mxu0 0
    %343 = vmatmul.mubr.bf16.gmra.mrb[0].mxu0 %v81
    %v344 = vpop.f32.mrb[0].mxu0
    %v345 = vadd.f32 %v103, %v344
    %v346 = vpop.f32.mrb[0].mxu0
    %v347 = vadd.f32 %v107, %v346
    %v348 = vpop.f32.mrb[0].mxu0
    %v349 = vpop.f32.mrb[0].mxu0
    %350 = vdwg.mxu0
    %v351 = vsub.f32 0.0, %v225
    %v352 = vsub.f32 0.0, %v229
    %v353 = vsub.f32 0.0, %v235
    %v354 = vsub.f32 0.0, %v239
    %v355 = vsub.f32 0.0, %v245
    %v356 = vsub.f32 0.0, %v249
    %v357 = vsub.f32 0.0, %v255
    %v358 = vsub.f32 0.0, %v259
    %v359 = vsub.f32 0.0, %v265
    %v360 = vsub.f32 0.0, %v269
    %v361 = vsub.f32 0.0, %v275
    %v362 = vsub.f32 0.0, %v279
    %v363 = vsub.f32 0.0, %v285
    %v364 = vsub.f32 0.0, %v289
    %v365 = vsub.f32 0.0, %v295
    %v366 = vsub.f32 0.0, %v299
    %v367 = vsub.f32 0.0, %v305
    %v368 = vsub.f32 0.0, %v309
    %v369 = vsub.f32 0.0, %v315
    %v370 = vsub.f32 0.0, %v319
    %v371 = vsub.f32 0.0, %v325
    %v372 = vsub.f32 0.0, %v329
    %v373 = vsub.f32 0.0, %v335
    %v374 = vsub.f32 0.0, %v339
    %v375 = vsub.f32 0.0, %v345
    %v376 = vmul.f32 %v351, 1.442695
    %v377 = vpow.pop %v376
    %v378 = vmul.f32 %v352, 1.442695
    %v379 = vpow.pop %v378
    %v380 = vmul.f32 %v353, 1.442695
    %v381 = vpow.pop %v380
    %v382 = vmul.f32 %v354, 1.442695
    %v383 = vpow.pop %v382
    %v384 = vmul.f32 %v355, 1.442695
    %v385 = vpow.pop %v384
    %v386 = vmul.f32 %v356, 1.442695
    %v387 = vpow.pop %v386
    %v388 = vmul.f32 %v357, 1.442695
    %v389 = vpow.pop %v388
    %v390 = vmul.f32 %v358, 1.442695
    %v391 = vpow.pop %v390
    %v392 = vmul.f32 %v359, 1.442695
    %v393 = vpow.pop %v392
    %v394 = vmul.f32 %v360, 1.442695
    %v395 = vpow.pop %v394
    %v396 = vmul.f32 %v361, 1.442695
    %v397 = vpow.pop %v396
    %v398 = vmul.f32 %v362, 1.442695
    %v399 = vpow.pop %v398
    %v400 = vmul.f32 %v363, 1.442695
    %v401 = vpow.pop %v400
    %v402 = vmul.f32 %v364, 1.442695
    %v403 = vpow.pop %v402
    %v404 = vmul.f32 %v365, 1.442695
    %v405 = vpow.pop %v404
    %v406 = vmul.f32 %v366, 1.442695
    %v407 = vpow.pop %v406
    %v408 = vmul.f32 %v367, 1.442695
    %v409 = vpow.pop %v408
    %v410 = vmul.f32 %v368, 1.442695
    %v411 = vpow.pop %v410
    %v412 = vmul.f32 %v369, 1.442695
    %v413 = vpow.pop %v412
    %v414 = vmul.f32 %v370, 1.442695
    %v415 = vpow.pop %v414
    %v416 = vmul.f32 %v371, 1.442695
    %v417 = vpow.pop %v416
    %v418 = vmul.f32 %v372, 1.442695
    %v419 = vpow.pop %v418
    %v420 = vmul.f32 %v373, 1.442695
    %v421 = vpow.pop %v420
    %v422 = vmul.f32 %v374, 1.442695
    %v423 = vpow.pop %v422
    %v424 = vmul.f32 %v375, 1.442695
    %v425 = vpow.pop %v424
    %v426 = vadd.f32 %v377, 1.0
    %v427 = vadd.f32 %v379, 1.0
    %v428 = vadd.f32 %v381, 1.0
    %v429 = vadd.f32 %v383, 1.0
    %v430 = vadd.f32 %v385, 1.0
    %v431 = vadd.f32 %v387, 1.0
    %v432 = vadd.f32 %v389, 1.0
    %v433 = vadd.f32 %v391, 1.0
    %v434 = vadd.f32 %v393, 1.0
    %v435 = vadd.f32 %v395, 1.0
    %v436 = vadd.f32 %v397, 1.0
    %v437 = vadd.f32 %v399, 1.0
    %v438 = vadd.f32 %v401, 1.0
    %v439 = vadd.f32 %v403, 1.0
    %v440 = vadd.f32 %v405, 1.0
    %v441 = vadd.f32 %v407, 1.0
    %v442 = vadd.f32 %v409, 1.0
    %v443 = vadd.f32 %v411, 1.0
    %v444 = vadd.f32 %v413, 1.0
    %v445 = vadd.f32 %v415, 1.0
    %v446 = vadd.f32 %v417, 1.0
    %v447 = vadd.f32 %v419, 1.0
    %v448 = vadd.f32 %v421, 1.0
    %v449 = vadd.f32 %v423, 1.0
    %v450 = vadd.f32 %v425, 1.0
    %v451 = vrcp.pop %v426
    %v452 = vrcp.pop %v427
    %v453 = vrcp.pop %v428
    %v454 = vrcp.pop %v429
    %v455 = vrcp.pop %v430
    %v456 = vrcp.pop %v431
    %v457 = vrcp.pop %v432
    %v458 = vrcp.pop %v433
    %v459 = vrcp.pop %v434
    %v460 = vrcp.pop %v435
    %v461 = vrcp.pop %v436
    %v462 = vrcp.pop %v437
    %v463 = vrcp.pop %v438
    %v464 = vrcp.pop %v439
    %v465 = vrcp.pop %v440
    %v466 = vrcp.pop %v441
    %v467 = vrcp.pop %v442
    %v468 = vrcp.pop %v443
    %v469 = vrcp.pop %v444
    %v470 = vrcp.pop %v445
    %v471 = vrcp.pop %v446
    %v472 = vrcp.pop %v447
    %v473 = vrcp.pop %v448
    %v474 = vrcp.pop %v449
    %v475 = vrcp.pop %v450
    %v476 = vmul.f32 %v451, %v227
    %v477 = vmul.f32 %v452, %v231
    %v478 = vmul.f32 %v453, %v237
    %v479 = vmul.f32 %v454, %v241
    %v480 = vmul.f32 %v455, %v247
    %v481 = vmul.f32 %v456, %v251
    %v482 = vmul.f32 %v457, %v257
    %v483 = vmul.f32 %v458, %v261
    %v484 = vmul.f32 %v459, %v267
    %v485 = vmul.f32 %v460, %v271
    %v486 = vmul.f32 %v461, %v277
    %v487 = vmul.f32 %v462, %v281
    %v488 = vmul.f32 %v463, %v287
    %v489 = vmul.f32 %v464, %v291
    %v490 = vmul.f32 %v465, %v297
    %v491 = vmul.f32 %v466, %v301
    %v492 = vmul.f32 %v467, %v307
    %v493 = vmul.f32 %v468, %v311
    %v494 = vmul.f32 %v469, %v317
    %v495 = vmul.f32 %v470, %v321
    %v496 = vmul.f32 %v471, %v327
    %v497 = vmul.f32 %v472, %v331
    %v498 = vmul.f32 %v473, %v337
    %v499 = vmul.f32 %v474, %v341
    %v500 = vmul.f32 %v475, %v347
    %501 = vst [vmem:[#allocation7] sm:$0xff] %v476
    %502 = vst [vmem:[#allocation7 + $0x8] sm:$0xff] %v477
    %503 = vst [vmem:[#allocation7 + $0x10] sm:$0xff] %v478
    %504 = vst [vmem:[#allocation7 + $0x18] sm:$0xff] %v479
    %505 = vst [vmem:[#allocation7 + $0x20] sm:$0xff] %v480
    %506 = vst [vmem:[#allocation7 + $0x28] sm:$0xff] %v481
    %507 = vst [vmem:[#allocation7 + $0x30] sm:$0xff] %v482
    %508 = vst [vmem:[#allocation7 + $0x38] sm:$0xff] %v483
    %509 = vst [vmem:[#allocation7 + $0x40] sm:$0xff] %v484
    %510 = vst [vmem:[#allocation7 + $0x48] sm:$0xff] %v485
    %511 = vst [vmem:[#allocation7 + $0x50] sm:$0xff] %v486
    %512 = vst [vmem:[#allocation7 + $0x58] sm:$0xff] %v487
    %513 = vst [vmem:[#allocation7 + $0x60] sm:$0xff] %v488
    %514 = vst [vmem:[#allocation7 + $0x68] sm:$0xff] %v489
    %515 = vst [vmem:[#allocation7 + $0x70] sm:$0xff] %v490
    %516 = vst [vmem:[#allocation7 + $0x78] sm:$0xff] %v491
    %517 = vst [vmem:[#allocation7 + $0x80] sm:$0xff] %v492
    %518 = vst [vmem:[#allocation7 + $0x88] sm:$0xff] %v493
    %519 = vst [vmem:[#allocation7 + $0x90] sm:$0xff] %v494
    %520 = vst [vmem:[#allocation7 + $0x98] sm:$0xff] %v495
    %521 = vst [vmem:[#allocation7 + $0xa0] sm:$0xff] %v496
    %522 = vst [vmem:[#allocation7 + $0xa8] sm:$0xff] %v497
    %523 = vst [vmem:[#allocation7 + $0xb0] sm:$0xff] %v498
    %524 = vst [vmem:[#allocation7 + $0xb8] sm:$0xff] %v499
    %525 = vst [vmem:[#allocation7 + $0xc0] sm:$0xff] %v500
    // Predicated region
    $region22: #{tpu_custom_call.1} parent=1 // pred_check
      _
    $region23: #{tpu_custom_call.1} parent=1 // pred_check_branch
      %527 = sbr.rel (0) target = $region25
    $region24: #{tpu_custom_call.1} parent=1 // pred_region
      %s529 = ssub.s32 3200, 3200
      %530 = vsyncadd [#allocation4], %s529
      %s531 = sshll.u32 [#allocation7], 4
      %s532 = int_to_ptr.vmem [resolvable:$true] %s531
      %537 = dma.vmem_to_hbm [thread:$0]  %s532, 3200, %s3, [#allocation4], 128, 128, 8
    $region25: #{tpu_custom_call.1} parent=1 // pred_fallthru
      _
    // Predicated region
    $region26: #{tpu_custom_call.1} parent=1 // pred_check
      _
    $region27: #{tpu_custom_call.1} parent=1 // pred_check_branch
      %539 = sbr.rel (0) target = $region29
    $region28: #{tpu_custom_call.1} parent=1 // pred_region
      %540 = dma.done [#allocation4], 3200
    $region29: #{tpu_custom_call.1} parent=1 // pred_fallthru
      _
    %541 = vsyncpa [#allocation3], 1
    %542 = vsyncpa [#allocation6], 1
    %543 = vsyncpa [#allocation4], 1

</llo_original>
